<compile_context>
chip_gen: v7x
topology: tpu7x:2x2x1
jax: 0.10.0
libtpu: 0.0.40
codegen_flags: <defaults>
</compile_context>

<pallas_src>
import jax
import jax.numpy as jnp
import numpy as np
from jax.experimental import pallas as pl
from jax.experimental.pallas import tpu as pltpu


def attention_memory_kernel(hidden_ref, whcat_ref, bacat_ref, vcat_ref,
                            emb_g_ref, we_bd_ref, emb_cg_ref,
                            wout_ref, bout_ref, attn_ref, out_ref):
    B, C = hidden_ref.shape
    G = emb_g_ref.shape[0]
    NCG, D = emb_cg_ref.shape
    NC = NCG // G

    # (1) All cells' hidden projection: ONE lane-dense MXU matmul -> [B, NC*C].
    h_cat = jnp.dot(hidden_ref[...], whcat_ref[...],
                    preferred_element_type=jnp.float32)

    # (2) All cells' embedding projection: ONE lane-dense MXU matmul with a
    #     block-diagonal per-cell weight -> [G, NC*C].
    e_cat = jnp.dot(emb_g_ref[...], we_bd_ref[...],
                    preferred_element_type=jnp.float32)

    # (3) energy for every (batch, gst, cell) in a single lane-dense slab:
    #     [B, G, NC*C]  (exactly 2 vregs at the test shapes).
    energy = jnp.tanh(h_cat[:, None, :] + e_cat[None, :, :]
                      + bacat_ref[...][None, :, :])

    v_all = vcat_ref[...]                                    # [1, NC*C]

    # (4)+(5) per-cell score + softmax.  Static (trace-time) unrolled loop:
    # no grid steps, no DMA, just a few VPU/XLU ops per cell.  The exact f32
    # multiply+sum matches the module's v . energy semantics bit-for-bit in
    # structure (an MXU-routed score was considered but not worth the
    # precision perturbation in this overhead-bound kernel).
    att_list = []
    for c in range(NC):
        sl = slice(c * C, (c + 1) * C)
        s_c = jnp.sum(energy[:, :, sl] * v_all[None, :, sl], axis=-1)  # [B, G]
        m_c = jnp.max(s_c, axis=-1, keepdims=True)
        p_c = jnp.exp(s_c - m_c)
        # NOTE: pl.reciprocal(denom, approx=True) would offload the divide to
        # the EUP, but its approximation error breaches the 1e-4 rtol check.
        att_list.append(p_c / jnp.sum(p_c, axis=-1, keepdims=True))

    # (6) single lane-dense store, already in the torch.cat(dim=1) layout.
    attn_flat = jnp.concatenate(att_list, axis=-1)           # [B, NC*G]
    attn_ref[...] = attn_flat

    # (7) weighted GST vector summed over all cells as ONE matmul
    #     (attn_flat @ emb_cg == sum_c attn_c @ E_c), mean over cells, and the
    #     output Linear, all fused in the same invocation.
    weighted = jnp.dot(attn_flat, emb_cg_ref[...],
                       preferred_element_type=jnp.float32)   # [B, D]
    out_ref[...] = (jnp.dot(weighted * (1.0 / NC), wout_ref[...],
                            preferred_element_type=jnp.float32)
                    + bout_ref[...])


def _block_diag(blocks):
    """Place 2-D blocks along the diagonal of a zero matrix."""
    rows = sum(b.shape[0] for b in blocks)
    cols = sum(b.shape[1] for b in blocks)
    out = jnp.zeros((rows, cols), blocks[0].dtype)
    r = c = 0
    for b in blocks:
        out = out.at[r:r + b.shape[0], c:c + b.shape[1]].set(b)
        r += b.shape[0]
        c += b.shape[1]
    return out


@jax.jit
def attention_memory(hidden, emb, wh, we, ba, v, wout, bout):
    """hidden [B,C]; emb [NC,G,D]; wh [NC,C,C]; we [NC,D,C]; ba [NC,1,C];
    v [NC,1,C]; wout [D,O]; bout [1,O]  ->  (attn [B,NC*G], out [B,O])."""
    B, C = hidden.shape
    NC, G, D = emb.shape
    O = wout.shape[1]

    # ---- weight / embedding layout plumbing (pure rearrangement, no math on
    # ---- activations): present lane-dense operands to the kernel. ----
    whcat = jnp.transpose(wh, (1, 0, 2)).reshape(C, NC * C)   # [C, NC*C]
    bacat = ba.reshape(1, NC * C)                             # [1, NC*C]
    vcat = v.reshape(1, NC * C)                               # [1, NC*C]
    emb_g = jnp.transpose(emb, (1, 0, 2)).reshape(G, NC * D)  # [G, NC*D]
    we_bd = _block_diag([we[c] for c in range(NC)])           # [NC*D, NC*C]
    emb_cg = emb.reshape(NC * G, D)                           # [NC*G, D]

    def full(shape):
        return pl.BlockSpec(shape, lambda i: (0,) * len(shape))

    attn, out = pl.pallas_call(
        attention_memory_kernel,
        out_shape=(jax.ShapeDtypeStruct((B, NC * G), jnp.float32),
                   jax.ShapeDtypeStruct((B, O), jnp.float32)),
        grid_spec=pltpu.PrefetchScalarGridSpec(
            num_scalar_prefetch=0,
            grid=(1,),   # everything is resident in VMEM: single invocation
            in_specs=[
                full((B, C)),            # hidden
                full((C, NC * C)),       # whcat
                full((1, NC * C)),       # bacat
                full((1, NC * C)),       # vcat
                full((G, NC * D)),       # emb (gst-major, cells on lanes)
                full((NC * D, NC * C)),  # block-diagonal emb-projection weight
                full((NC * G, D)),       # emb (cell-major rows) for weighted sum
                full((D, O)),            # out W^T
                full((1, O)),            # out bias
            ],
            out_specs=(full((B, NC * G)),  # attention, final layout
                       full((B, O))),      # output Linear
        ),
        compiler_params=pltpu.CompilerParams(
            dimension_semantics=("arbitrary",)),
    )(hidden, whcat, bacat, vcat, emb_g, we_bd, emb_cg, wout, bout)
    return attn, out


def reference(hidden, emb, wh, we, ba, v, wout, bout):
    """Pure-JAX mirror of the PyTorch forward pass."""
    NC = emb.shape[0]
    atts, ws = [], []
    for ii in range(NC):
        E = emb[ii]
        h_proj = hidden @ wh[ii]
        e_proj = E @ we[ii]
        energy = jnp.tanh(h_proj[:, None, :] + e_proj[None, :, :]
                          + ba[ii][None, :, :])
        scores = jnp.sum(energy * v[ii][None, :, :], axis=-1)
        att = jax.nn.softmax(scores, axis=1)
        atts.append(att)
        ws.append(att @ E)
    attention = jnp.concatenate(atts, axis=1)
    weighted = jnp.mean(jnp.stack(ws, axis=1), axis=1)
    return attention, weighted @ wout + bout


if __name__ == "__main__":
    # Small shapes consistent with the module's forward.
    B = 2              # batch
    gst_dim = 32       # D
    cond = 32          # C (conditioning_size)
    num_gst = 8        # G
    num_cells = 4      # NC
    out_size = 16      # O

    key = jax.random.PRNGKey(0)
    keys = jax.random.split(key, 8)

    hidden = jax.random.normal(keys[0], (B, cond), jnp.float32)

    # Deterministic parameter init (shapes follow the module's __init__):
    #   gst[ii]  : Embedding(num_gst, gst_dim)        -> emb  [NC, G, D]
    #   attn[ii] : Linear(gst_dim+cond, cond)         -> split into
    #              wh [NC, C, C] (hidden part, pre-transposed) and
    #              we [NC, D, C] (embedding part, pre-transposed), ba [NC,1,C]
    #   v[ii]    : Parameter(cond)                    -> v    [NC, 1, C]
    #   out      : Linear(gst_dim, output_size)       -> wout [D, O], bout [1,O]
    emb = jax.random.normal(keys[1], (num_cells, num_gst, gst_dim), jnp.float32)
    bound = 1.0 / np.sqrt(gst_dim + cond)
    wh = jax.random.uniform(keys[2], (num_cells, cond, cond), jnp.float32,
                            -bound, bound)
    we = jax.random.uniform(keys[3], (num_cells, gst_dim, cond), jnp.float32,
                            -bound, bound)
    ba = jax.random.uniform(keys[4], (num_cells, 1, cond), jnp.float32,
                            -bound, bound)
    v = jax.random.uniform(keys[5], (num_cells, 1, cond), jnp.float32, 0.0, 1.0)
    wout = jax.random.uniform(keys[6], (gst_dim, out_size), jnp.float32,
                              -1.0 / np.sqrt(gst_dim), 1.0 / np.sqrt(gst_dim))
    bout = jax.random.uniform(keys[7], (1, out_size), jnp.float32,
                              -1.0 / np.sqrt(gst_dim), 1.0 / np.sqrt(gst_dim))

    attn_out, out = attention_memory(hidden, emb, wh, we, ba, v, wout, bout)
    jax.block_until_ready((attn_out, out))

    ref_attn, ref_out = reference(hidden, emb, wh, we, ba, v, wout, bout)
    np.testing.assert_allclose(np.asarray(attn_out), np.asarray(ref_attn),
                               rtol=1e-4, atol=1e-5)
    np.testing.assert_allclose(np.asarray(out), np.asarray(ref_out),
                               rtol=1e-4, atol=1e-5)

    assert attn_out.shape == (B, num_cells * num_gst)
    assert out.shape == (B, out_size)
    print("KERNEL_OK")
</pallas_src>

<mosaic_0001>
module attributes {stable_mosaic.version = 11 : i64} {
  func.func @attention_memory_kernel(%arg0: i32, %arg1: memref<2x32xf32, #tpu.memory_space<vmem>>, %arg2: memref<32x128xf32, #tpu.memory_space<vmem>>, %arg3: memref<1x128xf32, #tpu.memory_space<vmem>>, %arg4: memref<1x128xf32, #tpu.memory_space<vmem>>, %arg5: memref<8x128xf32, #tpu.memory_space<vmem>>, %arg6: memref<128x128xf32, #tpu.memory_space<vmem>>, %arg7: memref<32x32xf32, #tpu.memory_space<vmem>>, %arg8: memref<32x16xf32, #tpu.memory_space<vmem>>, %arg9: memref<1x16xf32, #tpu.memory_space<vmem>>, %arg10: memref<2x32xf32, #tpu.memory_space<vmem>>, %arg11: memref<2x16xf32, #tpu.memory_space<vmem>>) attributes {dimension_semantics = [#tpu.dimension_semantics<arbitrary>], iteration_bounds = array<i64: 1>, scalar_prefetch = 0 : i64, scratch_operands = 0 : i64, tpu.core_type = #tpu.core_type<tc>, window_params = [{pipeline_mode = #tpu.pipeline_mode<synchronous>, transform_indices = @transform_0, window_bounds = array<i64: 2, 32>}, {pipeline_mode = #tpu.pipeline_mode<synchronous>, transform_indices = @transform_1, window_bounds = array<i64: 32, 128>}, {pipeline_mode = #tpu.pipeline_mode<synchronous>, transform_indices = @transform_2, window_bounds = array<i64: 1, 128>}, {pipeline_mode = #tpu.pipeline_mode<synchronous>, transform_indices = @transform_3, window_bounds = array<i64: 1, 128>}, {pipeline_mode = #tpu.pipeline_mode<synchronous>, transform_indices = @transform_4, window_bounds = array<i64: 8, 128>}, {pipeline_mode = #tpu.pipeline_mode<synchronous>, transform_indices = @transform_5, window_bounds = array<i64: 128, 128>}, {pipeline_mode = #tpu.pipeline_mode<synchronous>, transform_indices = @transform_6, window_bounds = array<i64: 32, 32>}, {pipeline_mode = #tpu.pipeline_mode<synchronous>, transform_indices = @transform_7, window_bounds = array<i64: 32, 16>}, {pipeline_mode = #tpu.pipeline_mode<synchronous>, transform_indices = @transform_8, window_bounds = array<i64: 1, 16>}, {pipeline_mode = #tpu.pipeline_mode<synchronous>, transform_indices = @transform_9, window_bounds = array<i64: 2, 32>}, {pipeline_mode = #tpu.pipeline_mode<synchronous>, transform_indices = @transform_10, window_bounds = array<i64: 2, 16>}]} {
    %c0 = arith.constant 0 : index
    %c0_0 = arith.constant 0 : index
    %0 = vector.load %arg1[%c0, %c0_0] : memref<2x32xf32, #tpu.memory_space<vmem>>, vector<2x32xf32>
    %c0_1 = arith.constant 0 : index
    %c0_2 = arith.constant 0 : index
    %1 = vector.load %arg2[%c0_1, %c0_2] : memref<32x128xf32, #tpu.memory_space<vmem>>, vector<32x128xf32>
    %cst = arith.constant dense<0.000000e+00> : vector<2x128xf32>
    %2 = tpu.matmul %0, %1, %cst {dimension_numbers = #tpu.dot_dimension_numbers<[1], [0], [0], [1], [0, 0, 1, 1], [], []>} : vector<2x32xf32>, vector<32x128xf32>, vector<2x128xf32> -> vector<2x128xf32>
    %c0_3 = arith.constant 0 : index
    %c0_4 = arith.constant 0 : index
    %3 = vector.load %arg5[%c0_3, %c0_4] : memref<8x128xf32, #tpu.memory_space<vmem>>, vector<8x128xf32>
    %c0_5 = arith.constant 0 : index
    %c0_6 = arith.constant 0 : index
    %4 = vector.load %arg6[%c0_5, %c0_6] : memref<128x128xf32, #tpu.memory_space<vmem>>, vector<128x128xf32>
    %cst_7 = arith.constant dense<0.000000e+00> : vector<8x128xf32>
    %5 = tpu.matmul %3, %4, %cst_7 {dimension_numbers = #tpu.dot_dimension_numbers<[1], [0], [0], [1], [0, 0, 1, 1], [], []>} : vector<8x128xf32>, vector<128x128xf32>, vector<8x128xf32> -> vector<8x128xf32>
    %6 = vector.shape_cast %2 : vector<2x128xf32> to vector<2x1x128xf32>
    %7 = vector.shape_cast %5 : vector<8x128xf32> to vector<1x8x128xf32>
    %8 = vector.broadcast %6 : vector<2x1x128xf32> to vector<2x8x128xf32>
    %9 = vector.broadcast %7 : vector<1x8x128xf32> to vector<2x8x128xf32>
    %10 = arith.addf %8, %9 : vector<2x8x128xf32>
    %c0_8 = arith.constant 0 : index
    %c0_9 = arith.constant 0 : index
    %11 = vector.load %arg3[%c0_8, %c0_9] : memref<1x128xf32, #tpu.memory_space<vmem>>, vector<1x128xf32>
    %12 = vector.shape_cast %11 : vector<1x128xf32> to vector<1x1x128xf32>
    %13 = vector.broadcast %12 : vector<1x1x128xf32> to vector<2x8x128xf32>
    %14 = arith.addf %10, %13 : vector<2x8x128xf32>
    %15 = math.tanh %14 : vector<2x8x128xf32>
    %c0_10 = arith.constant 0 : index
    %c0_11 = arith.constant 0 : index
    %16 = vector.load %arg4[%c0_10, %c0_11] : memref<1x128xf32, #tpu.memory_space<vmem>>, vector<1x128xf32>
    %17 = vector.extract_strided_slice %15 {offsets = [0, 0, 0], sizes = [2, 8, 32], strides = [1, 1, 1]} : vector<2x8x128xf32> to vector<2x8x32xf32>
    %18 = vector.extract_strided_slice %16 {offsets = [0, 0], sizes = [1, 32], strides = [1, 1]} : vector<1x128xf32> to vector<1x32xf32>
    %19 = vector.shape_cast %18 : vector<1x32xf32> to vector<1x1x32xf32>
    %20 = vector.broadcast %19 : vector<1x1x32xf32> to vector<2x8x32xf32>
    %21 = arith.mulf %17, %20 : vector<2x8x32xf32>
    %cst_12 = arith.constant dense<0.000000e+00> : vector<2x8xf32>
    %22 = vector.multi_reduction <add>, %21, %cst_12 [2] : vector<2x8x32xf32> to vector<2x8xf32>
    %cst_13 = arith.constant dense<0xFF800000> : vector<2xf32>
    %23 = vector.multi_reduction <maximumf>, %22, %cst_13 [1] : vector<2x8xf32> to vector<2xf32>
    %24 = vector.shape_cast %23 : vector<2xf32> to vector<2x1xf32>
    %25 = vector.broadcast %24 : vector<2x1xf32> to vector<2x8xf32>
    %26 = arith.subf %22, %25 : vector<2x8xf32>
    %27 = math.exp %26 : vector<2x8xf32>
    %cst_14 = arith.constant dense<0.000000e+00> : vector<2xf32>
    %28 = vector.multi_reduction <add>, %27, %cst_14 [1] : vector<2x8xf32> to vector<2xf32>
    %29 = vector.shape_cast %28 : vector<2xf32> to vector<2x1xf32>
    %30 = vector.broadcast %29 : vector<2x1xf32> to vector<2x8xf32>
    %31 = arith.divf %27, %30 : vector<2x8xf32>
    %32 = vector.extract_strided_slice %15 {offsets = [0, 0, 32], sizes = [2, 8, 32], strides = [1, 1, 1]} : vector<2x8x128xf32> to vector<2x8x32xf32>
    %33 = vector.extract_strided_slice %16 {offsets = [0, 32], sizes = [1, 32], strides = [1, 1]} : vector<1x128xf32> to vector<1x32xf32>
    %34 = vector.shape_cast %33 : vector<1x32xf32> to vector<1x1x32xf32>
    %35 = vector.broadcast %34 : vector<1x1x32xf32> to vector<2x8x32xf32>
    %36 = arith.mulf %32, %35 : vector<2x8x32xf32>
    %cst_15 = arith.constant dense<0.000000e+00> : vector<2x8xf32>
    %37 = vector.multi_reduction <add>, %36, %cst_15 [2] : vector<2x8x32xf32> to vector<2x8xf32>
    %cst_16 = arith.constant dense<0xFF800000> : vector<2xf32>
    %38 = vector.multi_reduction <maximumf>, %37, %cst_16 [1] : vector<2x8xf32> to vector<2xf32>
    %39 = vector.shape_cast %38 : vector<2xf32> to vector<2x1xf32>
    %40 = vector.broadcast %39 : vector<2x1xf32> to vector<2x8xf32>
    %41 = arith.subf %37, %40 : vector<2x8xf32>
    %42 = math.exp %41 : vector<2x8xf32>
    %cst_17 = arith.constant dense<0.000000e+00> : vector<2xf32>
    %43 = vector.multi_reduction <add>, %42, %cst_17 [1] : vector<2x8xf32> to vector<2xf32>
    %44 = vector.shape_cast %43 : vector<2xf32> to vector<2x1xf32>
    %45 = vector.broadcast %44 : vector<2x1xf32> to vector<2x8xf32>
    %46 = arith.divf %42, %45 : vector<2x8xf32>
    %47 = vector.extract_strided_slice %15 {offsets = [0, 0, 64], sizes = [2, 8, 32], strides = [1, 1, 1]} : vector<2x8x128xf32> to vector<2x8x32xf32>
    %48 = vector.extract_strided_slice %16 {offsets = [0, 64], sizes = [1, 32], strides = [1, 1]} : vector<1x128xf32> to vector<1x32xf32>
    %49 = vector.shape_cast %48 : vector<1x32xf32> to vector<1x1x32xf32>
    %50 = vector.broadcast %49 : vector<1x1x32xf32> to vector<2x8x32xf32>
    %51 = arith.mulf %47, %50 : vector<2x8x32xf32>
    %cst_18 = arith.constant dense<0.000000e+00> : vector<2x8xf32>
    %52 = vector.multi_reduction <add>, %51, %cst_18 [2] : vector<2x8x32xf32> to vector<2x8xf32>
    %cst_19 = arith.constant dense<0xFF800000> : vector<2xf32>
    %53 = vector.multi_reduction <maximumf>, %52, %cst_19 [1] : vector<2x8xf32> to vector<2xf32>
    %54 = vector.shape_cast %53 : vector<2xf32> to vector<2x1xf32>
    %55 = vector.broadcast %54 : vector<2x1xf32> to vector<2x8xf32>
    %56 = arith.subf %52, %55 : vector<2x8xf32>
    %57 = math.exp %56 : vector<2x8xf32>
    %cst_20 = arith.constant dense<0.000000e+00> : vector<2xf32>
    %58 = vector.multi_reduction <add>, %57, %cst_20 [1] : vector<2x8xf32> to vector<2xf32>
    %59 = vector.shape_cast %58 : vector<2xf32> to vector<2x1xf32>
    %60 = vector.broadcast %59 : vector<2x1xf32> to vector<2x8xf32>
    %61 = arith.divf %57, %60 : vector<2x8xf32>
    %62 = vector.extract_strided_slice %15 {offsets = [0, 0, 96], sizes = [2, 8, 32], strides = [1, 1, 1]} : vector<2x8x128xf32> to vector<2x8x32xf32>
    %63 = vector.extract_strided_slice %16 {offsets = [0, 96], sizes = [1, 32], strides = [1, 1]} : vector<1x128xf32> to vector<1x32xf32>
    %64 = vector.shape_cast %63 : vector<1x32xf32> to vector<1x1x32xf32>
    %65 = vector.broadcast %64 : vector<1x1x32xf32> to vector<2x8x32xf32>
    %66 = arith.mulf %62, %65 : vector<2x8x32xf32>
    %cst_21 = arith.constant dense<0.000000e+00> : vector<2x8xf32>
    %67 = vector.multi_reduction <add>, %66, %cst_21 [2] : vector<2x8x32xf32> to vector<2x8xf32>
    %cst_22 = arith.constant dense<0xFF800000> : vector<2xf32>
    %68 = vector.multi_reduction <maximumf>, %67, %cst_22 [1] : vector<2x8xf32> to vector<2xf32>
    %69 = vector.shape_cast %68 : vector<2xf32> to vector<2x1xf32>
    %70 = vector.broadcast %69 : vector<2x1xf32> to vector<2x8xf32>
    %71 = arith.subf %67, %70 : vector<2x8xf32>
    %72 = math.exp %71 : vector<2x8xf32>
    %cst_23 = arith.constant dense<0.000000e+00> : vector<2xf32>
    %73 = vector.multi_reduction <add>, %72, %cst_23 [1] : vector<2x8xf32> to vector<2xf32>
    %74 = vector.shape_cast %73 : vector<2xf32> to vector<2x1xf32>
    %75 = vector.broadcast %74 : vector<2x1xf32> to vector<2x8xf32>
    %76 = arith.divf %72, %75 : vector<2x8xf32>
    %77 = tpu.concatenate %31, %46, %61, %76 in 1 : vector<2x8xf32>, vector<2x8xf32>, vector<2x8xf32>, vector<2x8xf32> -> vector<2x32xf32>
    %c0_24 = arith.constant 0 : index
    %c0_25 = arith.constant 0 : index
    %78 = vector.load %arg10[%c0_24, %c0_25] : memref<2x32xf32, #tpu.memory_space<vmem>>, vector<2x32xf32>
    tpu.vector_store %arg10[%c0_24, %c0_25], %77 {strides = array<i32>} : memref<2x32xf32, #tpu.memory_space<vmem>>, vector<2x32xf32>,
    %c0_26 = arith.constant 0 : index
    %c0_27 = arith.constant 0 : index
    %79 = vector.load %arg7[%c0_26, %c0_27] : memref<32x32xf32, #tpu.memory_space<vmem>>, vector<32x32xf32>
    %cst_28 = arith.constant dense<0.000000e+00> : vector<2x32xf32>
    %80 = tpu.matmul %77, %79, %cst_28 {dimension_numbers = #tpu.dot_dimension_numbers<[1], [0], [0], [1], [0, 0, 1, 1], [], []>} : vector<2x32xf32>, vector<32x32xf32>, vector<2x32xf32> -> vector<2x32xf32>
    %cst_29 = arith.constant 2.500000e-01 : f32
    %81 = vector.broadcast %cst_29 : f32 to vector<2x32xf32>
    %82 = arith.mulf %80, %81 : vector<2x32xf32>
    %c0_30 = arith.constant 0 : index
    %c0_31 = arith.constant 0 : index
    %83 = vector.load %arg8[%c0_30, %c0_31] : memref<32x16xf32, #tpu.memory_space<vmem>>, vector<32x16xf32>
    %cst_32 = arith.constant dense<0.000000e+00> : vector<2x16xf32>
    %84 = tpu.matmul %82, %83, %cst_32 {dimension_numbers = #tpu.dot_dimension_numbers<[1], [0], [0], [1], [0, 0, 1, 1], [], []>} : vector<2x32xf32>, vector<32x16xf32>, vector<2x16xf32> -> vector<2x16xf32>
    %c0_33 = arith.constant 0 : index
    %c0_34 = arith.constant 0 : index
    %85 = vector.load %arg9[%c0_33, %c0_34] : memref<1x16xf32, #tpu.memory_space<vmem>>, vector<1x16xf32>
    %86 = vector.broadcast %85 : vector<1x16xf32> to vector<2x16xf32>
    %87 = arith.addf %84, %86 : vector<2x16xf32>
    %c0_35 = arith.constant 0 : index
    %c0_36 = arith.constant 0 : index
    %88 = vector.load %arg11[%c0_35, %c0_36] : memref<2x16xf32, #tpu.memory_space<vmem>>, vector<2x16xf32>
    tpu.vector_store %arg11[%c0_35, %c0_36], %87 {strides = array<i32>} : memref<2x16xf32, #tpu.memory_space<vmem>>, vector<2x16xf32>,
    return
  }
  func.func @transform_0(%arg0: i32) -> (i32, i32) {
    %c0_i32 = arith.constant 0 : i32
    %c0_i32_0 = arith.constant 0 : i32
    %c0_i32_1 = arith.constant 0 : i32
    return %c0_i32, %c0_i32_0 : i32, i32
  }
  func.func @transform_1(%arg0: i32) -> (i32, i32) {
    %c0_i32 = arith.constant 0 : i32
    %c0_i32_0 = arith.constant 0 : i32
    %c0_i32_1 = arith.constant 0 : i32
    return %c0_i32, %c0_i32_0 : i32, i32
  }
  func.func @transform_2(%arg0: i32) -> (i32, i32) {
    %c0_i32 = arith.constant 0 : i32
    %c0_i32_0 = arith.constant 0 : i32
    %c0_i32_1 = arith.constant 0 : i32
    return %c0_i32, %c0_i32_0 : i32, i32
  }
  func.func @transform_3(%arg0: i32) -> (i32, i32) {
    %c0_i32 = arith.constant 0 : i32
    %c0_i32_0 = arith.constant 0 : i32
    %c0_i32_1 = arith.constant 0 : i32
    return %c0_i32, %c0_i32_0 : i32, i32
  }
  func.func @transform_4(%arg0: i32) -> (i32, i32) {
    %c0_i32 = arith.constant 0 : i32
    %c0_i32_0 = arith.constant 0 : i32
    %c0_i32_1 = arith.constant 0 : i32
    return %c0_i32, %c0_i32_0 : i32, i32
  }
  func.func @transform_5(%arg0: i32) -> (i32, i32) {
    %c0_i32 = arith.constant 0 : i32
    %c0_i32_0 = arith.constant 0 : i32
    %c0_i32_1 = arith.constant 0 : i32
    return %c0_i32, %c0_i32_0 : i32, i32
  }
  func.func @transform_6(%arg0: i32) -> (i32, i32) {
    %c0_i32 = arith.constant 0 : i32
    %c0_i32_0 = arith.constant 0 : i32
    %c0_i32_1 = arith.constant 0 : i32
    return %c0_i32, %c0_i32_0 : i32, i32
  }
  func.func @transform_7(%arg0: i32) -> (i32, i32) {
    %c0_i32 = arith.constant 0 : i32
    %c0_i32_0 = arith.constant 0 : i32
    %c0_i32_1 = arith.constant 0 : i32
    return %c0_i32, %c0_i32_0 : i32, i32
  }
  func.func @transform_8(%arg0: i32) -> (i32, i32) {
    %c0_i32 = arith.constant 0 : i32
    %c0_i32_0 = arith.constant 0 : i32
    %c0_i32_1 = arith.constant 0 : i32
    return %c0_i32, %c0_i32_0 : i32, i32
  }
  func.func @transform_9(%arg0: i32) -> (i32, i32) {
    %c0_i32 = arith.constant 0 : i32
    %c0_i32_0 = arith.constant 0 : i32
    %c0_i32_1 = arith.constant 0 : i32
    return %c0_i32, %c0_i32_0 : i32, i32
  }
  func.func @transform_10(%arg0: i32) -> (i32, i32) {
    %c0_i32 = arith.constant 0 : i32
    %c0_i32_0 = arith.constant 0 : i32
    %c0_i32_1 = arith.constant 0 : i32
    return %c0_i32, %c0_i32_0 : i32, i32
  }
}

</mosaic_0001>

<llo_original>
// kernel: attention_memory.1
$region0: #{attention_memory.1}
  #allocation0 [shape = 'u32[]', space=smem, size = 0x4, offset = 0x4, fixed_abs, tag = 'smem constant byte address 0x4 - core index']
  #allocation1 [shape = 'u32[144,128]{1,0:T(1,128)}', space=vmem, size = 0x12000, scoped, tag = 'internal scratch']
  %s0 = inlined_call_operand.vmem [shape: f32[2,32], index: 0, kind: input, shape index: {}]
  %s1 = inlined_call_operand.vmem [shape: f32[32,128], index: 1, kind: input, shape index: {}]
  %s2 = inlined_call_operand.vmem [shape: f32[1,128], index: 2, kind: input, shape index: {}]
  %s3 = inlined_call_operand.vmem [shape: f32[1,128], index: 3, kind: input, shape index: {}]
  %s4 = inlined_call_operand.vmem [shape: f32[8,128], index: 4, kind: input, shape index: {}]
  %s5 = inlined_call_operand.vmem [shape: f32[128,128], index: 5, kind: input, shape index: {}]
  %s6 = inlined_call_operand.vmem [shape: f32[32,32], index: 6, kind: input, shape index: {}]
  %s7 = inlined_call_operand.vmem [shape: f32[32,16], index: 7, kind: input, shape index: {}]
  %s8 = inlined_call_operand.vmem [shape: f32[1,16], index: 8, kind: input, shape index: {}]
  %s9 = inlined_call_operand.hbm [shape: f32[2,32], index: 9, kind: output, shape index: {0}]
  %s10 = inlined_call_operand.hbm [shape: f32[2,16], index: 10, kind: output, shape index: {1}]
  %11 = xla_tuple %s9, %s10
  %s12 = sld [smem:[#allocation0]]
  $region54: #{attention_memory.1} parent=0
    _
  %s14 = ssub.s32 1, %s12
  %s15 = scalar_select 0, %s14, %s12
  $region1: #{attention_memory.1} parent=0
    #allocation2 [shape = 'u8[1024]{0}', space=vmem, size = 0x400, scoped, tag = 'output window, operand 0, single buffered']
    #allocation3 [shape = 's32[1]{0}', space=sflag, size = 0x4, scoped, tag = 'scoped memory for attention_memory.1']
    #allocation4 [shape = 'u8[1024]{0}', space=vmem, size = 0x400, scoped, tag = 'output window, operand 1, single buffered']
    #allocation5 [shape = 's32[1]{0}', space=sflag, size = 0x4, scoped, tag = 'scoped memory for attention_memory.1']
    %16 = vsyncpa [#allocation3], 0
    %17 = vsyncpa [#allocation5], 0
    // Predicated region
    $region2: #{attention_memory.1} parent=1 // pred_check
      _
    $region3: #{attention_memory.1} parent=1 // pred_check_branch
      %19 = sbr.rel (0) target = $region5
    $region4: #{attention_memory.1} parent=1 // pred_region
      _
    $region5: #{attention_memory.1} parent=1 // pred_fallthru
      _
    // Predicated region
    $region6: #{attention_memory.1} parent=1 // pred_check
      _
    $region7: #{attention_memory.1} parent=1 // pred_check_branch
      %21 = sbr.rel (0) target = $region9
    $region8: #{attention_memory.1} parent=1 // pred_region
      _
    $region9: #{attention_memory.1} parent=1 // pred_fallthru
      _
    // Predicated region
    $region10: #{attention_memory.1} parent=1 // pred_check
      _
    $region11: #{attention_memory.1} parent=1 // pred_check_branch
      %23 = sbr.rel (0) target = $region13
    $region12: #{attention_memory.1} parent=1 // pred_region
      _
    $region13: #{attention_memory.1} parent=1 // pred_fallthru
      _
    // Predicated region
    $region14: #{attention_memory.1} parent=1 // pred_check
      _
    $region15: #{attention_memory.1} parent=1 // pred_check_branch
      %25 = sbr.rel (0) target = $region17
    $region16: #{attention_memory.1} parent=1 // pred_region
      _
    $region17: #{attention_memory.1} parent=1 // pred_fallthru
      _
    // Predicated region
    $region18: #{attention_memory.1} parent=1 // pred_check
      _
    $region19: #{attention_memory.1} parent=1 // pred_check_branch
      %27 = sbr.rel (0) target = $region21
    $region20: #{attention_memory.1} parent=1 // pred_region
      _
    $region21: #{attention_memory.1} parent=1 // pred_fallthru
      _
    // Predicated region
    $region22: #{attention_memory.1} parent=1 // pred_check
      _
    $region23: #{attention_memory.1} parent=1 // pred_check_branch
      %29 = sbr.rel (0) target = $region25
    $region24: #{attention_memory.1} parent=1 // pred_region
      _
    $region25: #{attention_memory.1} parent=1 // pred_fallthru
      _
    // Predicated region
    $region26: #{attention_memory.1} parent=1 // pred_check
      _
    $region27: #{attention_memory.1} parent=1 // pred_check_branch
      %31 = sbr.rel (0) target = $region29
    $region28: #{attention_memory.1} parent=1 // pred_region
      _
    $region29: #{attention_memory.1} parent=1 // pred_fallthru
      _
    // Predicated region
    $region30: #{attention_memory.1} parent=1 // pred_check
      _
    $region31: #{attention_memory.1} parent=1 // pred_check_branch
      %33 = sbr.rel (0) target = $region33
    $region32: #{attention_memory.1} parent=1 // pred_region
      _
    $region33: #{attention_memory.1} parent=1 // pred_fallthru
      _
    // Predicated region
    $region34: #{attention_memory.1} parent=1 // pred_check
      _
    $region35: #{attention_memory.1} parent=1 // pred_check_branch
      %35 = sbr.rel (0) target = $region37
    $region36: #{attention_memory.1} parent=1 // pred_region
      _
    $region37: #{attention_memory.1} parent=1 // pred_fallthru
      _
    %v36 = vld [vmem:[%s0] sm:$0x3]
    %v37 = vld [vmem:[%s1] sm:$0xff]
    %v38 = vld [vmem:[%s1 + $0x8] sm:$0xff]
    %v39 = vld [vmem:[%s1 + $0x10] sm:$0xff]
    %v40 = vld [vmem:[%s1 + $0x18] sm:$0xff]
    %vm41 = vcmask 261120
    %v43 = vsel %vm41, %v36, 0
    %45 = vmatprep.subr.mxu0 0.0
    %46 = vmatpush1.msra.mxu0 %v37
    %47 = vmatprep.subr.mxu0 0.0
    %48 = vmatpush1.msra.mxu0 %v38
    %49 = vmatprep.subr.mxu0 0.0
    %50 = vmatpush1.msra.mxu0 %v39
    %51 = vmatprep.subr.mxu0 0.0
    %52 = vmatpush1.msra.mxu0 %v40
    %53 = vmatprep.subr.mxu0 0.0
    %54 = vmatpush1.msra.mxu0 0.0
    %55 = vmatprep.subr.mxu0 0.0
    %56 = vmatpush1.msra.mxu0 0.0
    %57 = vmatprep.subr.mxu0 0.0
    %58 = vmatpush1.msra.mxu0 0.0
    %59 = vmatprep.subr.mxu0 0.0
    %60 = vmatpush1.msra.mxu0 0.0
    %61 = vmatprep.subr.mxu0 0.0
    %62 = vmatpush1.msra.mxu0 0.0
    %63 = vmatprep.subr.mxu0 0.0
    %64 = vmatpush1.msra.mxu0 0.0
    %65 = vmatprep.subr.mxu0 0.0
    %66 = vmatpush1.msra.mxu0 0.0
    %67 = vmatprep.subr.mxu0 0.0
    %68 = vmatpush1.msra.mxu0 0.0
    %69 = vmatprep.subr.mxu0 0.0
    %70 = vmatpush1.msra.mxu0 0.0
    %71 = vmatprep.subr.mxu0 0.0
    %72 = vmatpush1.msra.mxu0 0.0
    %73 = vmatprep.subr.mxu0 0.0
    %74 = vmatpush1.msra.mxu0 0.0
    %75 = vmatprep.subr.mxu0 0.0
    %76 = vmatpush1.msra.mxu0 0.0
    %77 = vmatprep.subr.mxu0 0.0
    %78 = vmatpush1.msra.mxu0 0.0
    %79 = vmatprep.subr.mxu0 0.0
    %80 = vmatpush1.msra.mxu0 0.0
    %81 = vmatprep.subr.mxu0 0.0
    %82 = vmatpush1.msra.mxu0 0.0
    %83 = vmatprep.subr.mxu0 0.0
    %84 = vmatpush1.msra.mxu0 0.0
    %85 = vmatprep.subr.mxu0 0.0
    %86 = vmatpush1.msra.mxu0 0.0
    %87 = vmatprep.subr.mxu0 0.0
    %88 = vmatpush1.msra.mxu0 0.0
    %89 = vmatprep.subr.mxu0 0.0
    %90 = vmatpush1.msra.mxu0 0.0
    %91 = vmatprep.subr.mxu0 0.0
    %92 = vmatpush1.msra.mxu0 0.0
    %93 = vmatprep.subr.mxu0 0.0
    %94 = vmatpush1.msra.mxu0 0.0
    %95 = vmatprep.subr.mxu0 0.0
    %96 = vmatpush1.msra.mxu0 0.0
    %97 = vmatprep.subr.mxu0 0.0
    %98 = vmatpush1.msra.mxu0 0.0
    %99 = vmatprep.subr.mxu0 0.0
    %100 = vmatpush1.msra.mxu0 0.0
    %101 = vmatprep.subr.mxu0 0.0
    %102 = vmatpush1.msra.mxu0 0.0
    %103 = vmatprep.subr.mxu0 0.0
    %104 = vmatpush1.msra.mxu0 0.0
    %105 = vmatprep.subr.mxu0 0.0
    %106 = vmatpush1.msra.mxu0 0.0
    %107 = vmatprep.subr.mxu0 0.0
    %108 = vmatpush1.msra.mxu0 0.0
    %109 = vmatprep.mubr.f32.mxu0 0.0
    %110 = vmatmul.mubr.f32.gmra.mrb[0].mxu0 %v43
    %v111 = vpop.f32.mrb[0].mxu0
    %v112 = vadd.f32 0.0, %v111
    %v113 = vpop.f32.mrb[0].mxu0
    %114 = vdwg.mxu0
    %v115 = vld [vmem:[%s4] sm:$0xff]
    %v116 = vld [vmem:[%s5] sm:$0xff]
    %v117 = vld [vmem:[%s5 + $0x8] sm:$0xff]
    %v118 = vld [vmem:[%s5 + $0x10] sm:$0xff]
    %v119 = vld [vmem:[%s5 + $0x18] sm:$0xff]
    %v120 = vld [vmem:[%s5 + $0x20] sm:$0xff]
    %v121 = vld [vmem:[%s5 + $0x28] sm:$0xff]
    %v122 = vld [vmem:[%s5 + $0x30] sm:$0xff]
    %v123 = vld [vmem:[%s5 + $0x38] sm:$0xff]
    %v124 = vld [vmem:[%s5 + $0x40] sm:$0xff]
    %v125 = vld [vmem:[%s5 + $0x48] sm:$0xff]
    %v126 = vld [vmem:[%s5 + $0x50] sm:$0xff]
    %v127 = vld [vmem:[%s5 + $0x58] sm:$0xff]
    %v128 = vld [vmem:[%s5 + $0x60] sm:$0xff]
    %v129 = vld [vmem:[%s5 + $0x68] sm:$0xff]
    %v130 = vld [vmem:[%s5 + $0x70] sm:$0xff]
    %v131 = vld [vmem:[%s5 + $0x78] sm:$0xff]
    %132 = vmatprep.subr.mxu0 0.0
    %133 = vmatpush1.msra.mxu0 %v116
    %134 = vmatprep.subr.mxu0 0.0
    %135 = vmatpush1.msra.mxu0 %v117
    %136 = vmatprep.subr.mxu0 0.0
    %137 = vmatpush1.msra.mxu0 %v118
    %138 = vmatprep.subr.mxu0 0.0
    %139 = vmatpush1.msra.mxu0 %v119
    %140 = vmatprep.subr.mxu0 0.0
    %141 = vmatpush1.msra.mxu0 %v120
    %142 = vmatprep.subr.mxu0 0.0
    %143 = vmatpush1.msra.mxu0 %v121
    %144 = vmatprep.subr.mxu0 0.0
    %145 = vmatpush1.msra.mxu0 %v122
    %146 = vmatprep.subr.mxu0 0.0
    %147 = vmatpush1.msra.mxu0 %v123
    %148 = vmatprep.subr.mxu0 0.0
    %149 = vmatpush1.msra.mxu0 %v124
    %150 = vmatprep.subr.mxu0 0.0
    %151 = vmatpush1.msra.mxu0 %v125
    %152 = vmatprep.subr.mxu0 0.0
    %153 = vmatpush1.msra.mxu0 %v126
    %154 = vmatprep.subr.mxu0 0.0
    %155 = vmatpush1.msra.mxu0 %v127
    %156 = vmatprep.subr.mxu0 0.0
    %157 = vmatpush1.msra.mxu0 %v128
    %158 = vmatprep.subr.mxu0 0.0
    %159 = vmatpush1.msra.mxu0 %v129
    %160 = vmatprep.subr.mxu0 0.0
    %161 = vmatpush1.msra.mxu0 %v130
    %162 = vmatprep.subr.mxu0 0.0
    %163 = vmatpush1.msra.mxu0 %v131
    %164 = vmatprep.subr.mxu0 0.0
    %165 = vmatpush1.msra.mxu0 0.0
    %166 = vmatprep.subr.mxu0 0.0
    %167 = vmatpush1.msra.mxu0 0.0
    %168 = vmatprep.subr.mxu0 0.0
    %169 = vmatpush1.msra.mxu0 0.0
    %170 = vmatprep.subr.mxu0 0.0
    %171 = vmatpush1.msra.mxu0 0.0
    %172 = vmatprep.subr.mxu0 0.0
    %173 = vmatpush1.msra.mxu0 0.0
    %174 = vmatprep.subr.mxu0 0.0
    %175 = vmatpush1.msra.mxu0 0.0
    %176 = vmatprep.subr.mxu0 0.0
    %177 = vmatpush1.msra.mxu0 0.0
    %178 = vmatprep.subr.mxu0 0.0
    %179 = vmatpush1.msra.mxu0 0.0
    %180 = vmatprep.subr.mxu0 0.0
    %181 = vmatpush1.msra.mxu0 0.0
    %182 = vmatprep.subr.mxu0 0.0
    %183 = vmatpush1.msra.mxu0 0.0
    %184 = vmatprep.subr.mxu0 0.0
    %185 = vmatpush1.msra.mxu0 0.0
    %186 = vmatprep.subr.mxu0 0.0
    %187 = vmatpush1.msra.mxu0 0.0
    %188 = vmatprep.subr.mxu0 0.0
    %189 = vmatpush1.msra.mxu0 0.0
    %190 = vmatprep.subr.mxu0 0.0
    %191 = vmatpush1.msra.mxu0 0.0
    %192 = vmatprep.subr.mxu0 0.0
    %193 = vmatpush1.msra.mxu0 0.0
    %194 = vmatprep.subr.mxu0 0.0
    %195 = vmatpush1.msra.mxu0 0.0
    %196 = vmatprep.mubr.f32.mxu0 0.0
    %197 = vmatmul.mubr.f32.gmra.mrb[0].mxu0 %v115
    %v198 = vpop.f32.mrb[0].mxu0
    %v199 = vadd.f32 0.0, %v198
    %v200 = vpop.f32.mrb[0].mxu0
    %201 = vdwg.mxu0
    %v204 = vunpack.c.l.s4 1966171168
    %v205 = vunpack.c.0.s8 %v204
    %v206 = vlaneseq
    %v207 = vshrl.u32 %v206, 7
    %v208 = vsub.s32 %v205, %v207
    %v209 = vrot.slane %v112, %v208
    %v210 = vcombine.high %v209, %v209
    %v212 = vunpack.c.l.s4 1966171168
    %v213 = vunpack.c.0.s8 %v212
    %v214 = vlaneseq
    %v215 = vshrl.u32 %v214, 7
    %v216 = vsub.s32 %v213, %v215
    %v217 = vrot.slane %v209, %v216
    %v219 = vunpack.c.l.s4 1966171168
    %v220 = vunpack.c.0.s8 %v219
    %v221 = vlaneseq
    %v222 = vshrl.u32 %v221, 7
    %v223 = vsub.s32 %v220, %v222
    %v224 = vrot.slane %v210, %v223
    %v225 = vlaneseq
    %v226 = vshrl.u32 %v225, 7
    %v227 = vsub.s32 0, %v226
    %v228 = vrot.slane %v217, %v227
    %v229 = vlaneseq
    %v230 = vshrl.u32 %v229, 7
    %v231 = vsub.s32 0, %v230
    %v232 = vrot.slane %v224, %v231
    %v235 = vadd.f32 %v228, %v199
    %v236 = vadd.f32 %v232, %v199
    %v237 = vld [vmem:[%s2] sm:$0x1]
    %v239 = vlaneseq
    %v240 = vshrl.u32 %v239, 7
    %v241 = vsub.s32 0, %v240
    %v242 = vrot.slane %v237, %v241
    %v244 = vadd.f32 %v235, %v242
    %v245 = vadd.f32 %v236, %v242
    %v246 = vtanh.pop %v244
    %v247 = vtanh.pop %v245
    %v248 = vld [vmem:[%s3] sm:$0x1]
    %v250 = vlaneseq
    %v251 = vshrl.u32 %v250, 7
    %v252 = vsub.s32 0, %v251
    %v253 = vrot.slane %v248, %v252
    %v255 = vmul.f32 %v246, %v253
    %v256 = vmul.f32 %v247, %v253
    %v257 = vsel %vm41, %v255, 0.0
    %258 = vadd.xlane.f32.xlu0 %v257
    %v259 = vpop.xlane.xlu0 %258
    %v260 = vsel %vm41, %v256, 0.0
    %261 = vadd.xlane.f32.xlu0 %v260
    %v262 = vpop.xlane.xlu0 %261
    %v265 = vlaneseq
    %v266 = vand.u32 %v265, 127
    %v267 = vlaneseq
    %v268 = vshrl.u32 %v267, 7
    %v269 = vsub.s32 %v266, %v268
    %v270 = vrot.slane %v259, %v269
    %v271 = vlaneseq
    %v272 = vshrl.u32 %v271, 7
    %v273 = vsub.s32 %v266, %v272
    %v274 = vrot.slane %v262, %v273
    %vm275 = vcmask 1041409
    %v276 = vsel %vm275, %v274, %v270
    %vm278 = vcmask 58368
    %v279 = vsel %vm278, %v276, -inf
    %280 = vmax.xlane.f32.xlu0 %v279
    %v281 = vpop.xlane.xlu0 %280
    %v283 = vlaneseq
    %v284 = vshrl.u32 %v283, 7
    %v285 = vsub.s32 0, %v284
    %v286 = vrot.slane %v281, %v285
    %v287 = vlaneseq
    %v288 = vshrl.u32 %v287, 7
    %v289 = vsub.s32 1, %v288
    %v290 = vrot.slane %v281, %v289
    %v293 = vsub.f32 %v259, %v286
    %v294 = vsub.f32 %v262, %v290
    %v295 = vmul.f32 %v293, 1.442695
    %v296 = vpow.pop %v295
    %v297 = vmul.f32 %v294, 1.442695
    %v298 = vpow.pop %v297
    %301 = vset.pattern.permute.xlu0 0
    %302 = vperm.xlu0 %301, %v296
    %v303 = vpop.permute.xlu0 %302
    %304 = vset.pattern.permute.xlu0 0
    %305 = vperm.xlu0 %304, %v298
    %v306 = vpop.permute.xlu0 %305
    %v307 = vlaneseq
    %v308 = vshrl.u32 %v307, 7
    %v309 = vsub.s32 %v266, %v308
    %v310 = vrot.slane %v303, %v309
    %v311 = vlaneseq
    %v312 = vshrl.u32 %v311, 7
    %v313 = vsub.s32 %v266, %v312
    %v314 = vrot.slane %v306, %v313
    %v315 = vsel %vm275, %v314, %v310
    %v317 = vsel %vm278, %v315, 0.0
    %318 = vadd.xlane.f32.xlu0 %v317
    %v319 = vpop.xlane.xlu0 %318
    %v321 = vlaneseq
    %v322 = vshrl.u32 %v321, 7
    %v323 = vsub.s32 0, %v322
    %v324 = vrot.slane %v319, %v323
    %v325 = vlaneseq
    %v326 = vshrl.u32 %v325, 7
    %v327 = vsub.s32 1, %v326
    %v328 = vrot.slane %v319, %v327
    %v331 = vrcp.pop %v324
    %v332 = vmul.f32 %v296, %v331
    %v333 = vrcp.pop %v328
    %v334 = vmul.f32 %v298, %v333
    %337 = vrot.lane.b32.xlu0 %v255, 96
    %v338 = vpop.permute.xlu0 %337
    %339 = vrot.lane.b32.xlu0 %v256, 96
    %v340 = vpop.permute.xlu0 %339
    %v343 = vsel %vm41, %v338, 0.0
    %344 = vadd.xlane.f32.xlu0 %v343
    %v345 = vpop.xlane.xlu0 %344
    %v346 = vsel %vm41, %v340, 0.0
    %347 = vadd.xlane.f32.xlu0 %v346
    %v348 = vpop.xlane.xlu0 %347
    %v351 = vlaneseq
    %v352 = vshrl.u32 %v351, 7
    %v353 = vsub.s32 %v266, %v352
    %v354 = vrot.slane %v345, %v353
    %v355 = vlaneseq
    %v356 = vshrl.u32 %v355, 7
    %v357 = vsub.s32 %v266, %v356
    %v358 = vrot.slane %v348, %v357
    %v359 = vsel %vm275, %v358, %v354
    %v361 = vsel %vm278, %v359, -inf
    %362 = vmax.xlane.f32.xlu0 %v361
    %v363 = vpop.xlane.xlu0 %362
    %v365 = vlaneseq
    %v366 = vshrl.u32 %v365, 7
    %v367 = vsub.s32 0, %v366
    %v368 = vrot.slane %v363, %v367
    %v369 = vlaneseq
    %v370 = vshrl.u32 %v369, 7
    %v371 = vsub.s32 1, %v370
    %v372 = vrot.slane %v363, %v371
    %v375 = vsub.f32 %v345, %v368
    %v376 = vsub.f32 %v348, %v372
    %v377 = vmul.f32 %v375, 1.442695
    %v378 = vpow.pop %v377
    %v379 = vmul.f32 %v376, 1.442695
    %v380 = vpow.pop %v379
    %383 = vset.pattern.permute.xlu0 0
    %384 = vperm.xlu0 %383, %v378
    %v385 = vpop.permute.xlu0 %384
    %386 = vset.pattern.permute.xlu0 0
    %387 = vperm.xlu0 %386, %v380
    %v388 = vpop.permute.xlu0 %387
    %v389 = vlaneseq
    %v390 = vshrl.u32 %v389, 7
    %v391 = vsub.s32 %v266, %v390
    %v392 = vrot.slane %v385, %v391
    %v393 = vlaneseq
    %v394 = vshrl.u32 %v393, 7
    %v395 = vsub.s32 %v266, %v394
    %v396 = vrot.slane %v388, %v395
    %v397 = vsel %vm275, %v396, %v392
    %v399 = vsel %vm278, %v397, 0.0
    %400 = vadd.xlane.f32.xlu0 %v399
    %v401 = vpop.xlane.xlu0 %400
    %v403 = vlaneseq
    %v404 = vshrl.u32 %v403, 7
    %v405 = vsub.s32 0, %v404
    %v406 = vrot.slane %v401, %v405
    %v407 = vlaneseq
    %v408 = vshrl.u32 %v407, 7
    %v409 = vsub.s32 1, %v408
    %v410 = vrot.slane %v401, %v409
    %v413 = vrcp.pop %v406
    %v414 = vmul.f32 %v378, %v413
    %v415 = vrcp.pop %v410
    %v416 = vmul.f32 %v380, %v415
    %417 = vrot.lane.b32.xlu0 %v255, 64
    %v418 = vpop.permute.xlu0 %417
    %419 = vrot.lane.b32.xlu0 %v256, 64
    %v420 = vpop.permute.xlu0 %419
    %v423 = vsel %vm41, %v418, 0.0
    %424 = vadd.xlane.f32.xlu0 %v423
    %v425 = vpop.xlane.xlu0 %424
    %v426 = vsel %vm41, %v420, 0.0
    %427 = vadd.xlane.f32.xlu0 %v426
    %v428 = vpop.xlane.xlu0 %427
    %v431 = vlaneseq
    %v432 = vshrl.u32 %v431, 7
    %v433 = vsub.s32 %v266, %v432
    %v434 = vrot.slane %v425, %v433
    %v435 = vlaneseq
    %v436 = vshrl.u32 %v435, 7
    %v437 = vsub.s32 %v266, %v436
    %v438 = vrot.slane %v428, %v437
    %v439 = vsel %vm275, %v438, %v434
    %v441 = vsel %vm278, %v439, -inf
    %442 = vmax.xlane.f32.xlu0 %v441
    %v443 = vpop.xlane.xlu0 %442
    %v445 = vlaneseq
    %v446 = vshrl.u32 %v445, 7
    %v447 = vsub.s32 0, %v446
    %v448 = vrot.slane %v443, %v447
    %v449 = vlaneseq
    %v450 = vshrl.u32 %v449, 7
    %v451 = vsub.s32 1, %v450
    %v452 = vrot.slane %v443, %v451
    %v455 = vsub.f32 %v425, %v448
    %v456 = vsub.f32 %v428, %v452
    %v457 = vmul.f32 %v455, 1.442695
    %v458 = vpow.pop %v457
    %v459 = vmul.f32 %v456, 1.442695
    %v460 = vpow.pop %v459
    %463 = vset.pattern.permute.xlu0 0
    %464 = vperm.xlu0 %463, %v458
    %v465 = vpop.permute.xlu0 %464
    %466 = vset.pattern.permute.xlu0 0
    %467 = vperm.xlu0 %466, %v460
    %v468 = vpop.permute.xlu0 %467
    %v469 = vlaneseq
    %v470 = vshrl.u32 %v469, 7
    %v471 = vsub.s32 %v266, %v470
    %v472 = vrot.slane %v465, %v471
    %v473 = vlaneseq
    %v474 = vshrl.u32 %v473, 7
    %v475 = vsub.s32 %v266, %v474
    %v476 = vrot.slane %v468, %v475
    %v477 = vsel %vm275, %v476, %v472
    %v479 = vsel %vm278, %v477, 0.0
    %480 = vadd.xlane.f32.xlu0 %v479
    %v481 = vpop.xlane.xlu0 %480
    %v483 = vlaneseq
    %v484 = vshrl.u32 %v483, 7
    %v485 = vsub.s32 0, %v484
    %v486 = vrot.slane %v481, %v485
    %v487 = vlaneseq
    %v488 = vshrl.u32 %v487, 7
    %v489 = vsub.s32 1, %v488
    %v490 = vrot.slane %v481, %v489
    %v493 = vrcp.pop %v486
    %v494 = vmul.f32 %v458, %v493
    %v495 = vrcp.pop %v490
    %v496 = vmul.f32 %v460, %v495
    %497 = vrot.lane.b32.xlu0 %v255, 32
    %v498 = vpop.permute.xlu0 %497
    %499 = vrot.lane.b32.xlu0 %v256, 32
    %v500 = vpop.permute.xlu0 %499
    %v503 = vsel %vm41, %v498, 0.0
    %504 = vadd.xlane.f32.xlu0 %v503
    %v505 = vpop.xlane.xlu0 %504
    %v506 = vsel %vm41, %v500, 0.0
    %507 = vadd.xlane.f32.xlu0 %v506
    %v508 = vpop.xlane.xlu0 %507
    %v511 = vlaneseq
    %v512 = vshrl.u32 %v511, 7
    %v513 = vsub.s32 %v266, %v512
    %v514 = vrot.slane %v505, %v513
    %v515 = vlaneseq
    %v516 = vshrl.u32 %v515, 7
    %v517 = vsub.s32 %v266, %v516
    %v518 = vrot.slane %v508, %v517
    %v519 = vsel %vm275, %v518, %v514
    %v521 = vsel %vm278, %v519, -inf
    %522 = vmax.xlane.f32.xlu0 %v521
    %v523 = vpop.xlane.xlu0 %522
    %v525 = vlaneseq
    %v526 = vshrl.u32 %v525, 7
    %v527 = vsub.s32 0, %v526
    %v528 = vrot.slane %v523, %v527
    %v529 = vlaneseq
    %v530 = vshrl.u32 %v529, 7
    %v531 = vsub.s32 1, %v530
    %v532 = vrot.slane %v523, %v531
    %v535 = vsub.f32 %v505, %v528
    %v536 = vsub.f32 %v508, %v532
    %v537 = vmul.f32 %v535, 1.442695
    %v538 = vpow.pop %v537
    %v539 = vmul.f32 %v536, 1.442695
    %v540 = vpow.pop %v539
    %543 = vset.pattern.permute.xlu0 0
    %544 = vperm.xlu0 %543, %v538
    %v545 = vpop.permute.xlu0 %544
    %546 = vset.pattern.permute.xlu0 0
    %547 = vperm.xlu0 %546, %v540
    %v548 = vpop.permute.xlu0 %547
    %v549 = vlaneseq
    %v550 = vshrl.u32 %v549, 7
    %v551 = vsub.s32 %v266, %v550
    %v552 = vrot.slane %v545, %v551
    %v553 = vlaneseq
    %v554 = vshrl.u32 %v553, 7
    %v555 = vsub.s32 %v266, %v554
    %v556 = vrot.slane %v548, %v555
    %v557 = vsel %vm275, %v556, %v552
    %v559 = vsel %vm278, %v557, 0.0
    %560 = vadd.xlane.f32.xlu0 %v559
    %v561 = vpop.xlane.xlu0 %560
    %v563 = vlaneseq
    %v564 = vshrl.u32 %v563, 7
    %v565 = vsub.s32 0, %v564
    %v566 = vrot.slane %v561, %v565
    %v567 = vlaneseq
    %v568 = vshrl.u32 %v567, 7
    %v569 = vsub.s32 1, %v568
    %v570 = vrot.slane %v561, %v569
    %v573 = vrcp.pop %v566
    %v574 = vmul.f32 %v538, %v573
    %v575 = vrcp.pop %v570
    %v576 = vmul.f32 %v540, %v575
    %579 = vset.pattern.permute.xlu0 0
    %580 = vperm.xlu0 %579, %v332
    %v581 = vpop.permute.xlu0 %580
    %582 = vset.pattern.permute.xlu0 0
    %583 = vperm.xlu0 %582, %v334
    %v584 = vpop.permute.xlu0 %583
    %v585 = vlaneseq
    %v586 = vshrl.u32 %v585, 7
    %v587 = vsub.s32 %v266, %v586
    %v588 = vrot.slane %v581, %v587
    %v589 = vlaneseq
    %v590 = vshrl.u32 %v589, 7
    %v591 = vsub.s32 %v266, %v590
    %v592 = vrot.slane %v584, %v591
    %v593 = vsel %vm275, %v592, %v588
    %597 = vset.pattern.permute.xlu0 0
    %598 = vperm.xlu0 %597, %v414
    %v599 = vpop.permute.xlu0 %598
    %600 = vset.pattern.permute.xlu0 0
    %601 = vperm.xlu0 %600, %v416
    %v602 = vpop.permute.xlu0 %601
    %v603 = vadd.s32 %v266, 4294967288
    %v604 = vlaneseq
    %v605 = vshrl.u32 %v604, 7
    %v606 = vsub.s32 %v603, %v605
    %v607 = vrot.slane %v599, %v606
    %v608 = vlaneseq
    %v609 = vshrl.u32 %v608, 7
    %v610 = vsub.s32 %v603, %v609
    %v611 = vrot.slane %v602, %v610
    %v612 = vsel %vm275, %v611, %v607
    %616 = vset.pattern.permute.xlu0 0
    %617 = vperm.xlu0 %616, %v494
    %v618 = vpop.permute.xlu0 %617
    %619 = vset.pattern.permute.xlu0 0
    %620 = vperm.xlu0 %619, %v496
    %v621 = vpop.permute.xlu0 %620
    %v622 = vadd.s32 %v266, 4294967280
    %v623 = vlaneseq
    %v624 = vshrl.u32 %v623, 7
    %v625 = vsub.s32 %v622, %v624
    %v626 = vrot.slane %v618, %v625
    %v627 = vlaneseq
    %v628 = vshrl.u32 %v627, 7
    %v629 = vsub.s32 %v622, %v628
    %v630 = vrot.slane %v621, %v629
    %v631 = vsel %vm275, %v630, %v626
    %635 = vset.pattern.permute.xlu0 0
    %636 = vperm.xlu0 %635, %v574
    %v637 = vpop.permute.xlu0 %636
    %638 = vset.pattern.permute.xlu0 0
    %639 = vperm.xlu0 %638, %v576
    %v640 = vpop.permute.xlu0 %639
    %v641 = vadd.s32 %v266, 4294967272
    %v642 = vlaneseq
    %v643 = vshrl.u32 %v642, 7
    %v644 = vsub.s32 %v641, %v643
    %v645 = vrot.slane %v637, %v644
    %v646 = vlaneseq
    %v647 = vshrl.u32 %v646, 7
    %v648 = vsub.s32 %v641, %v647
    %v649 = vrot.slane %v640, %v648
    %v650 = vsel %vm275, %v649, %v645
    %vm652 = vcmask 64512
    %v653 = vsel %vm652, %v593, %v612
    %vm654 = vcmask 130048
    %v655 = vsel %vm654, %v653, %v631
    %vm656 = vcmask 195584
    %v657 = vsel %vm656, %v655, %v650
    %vm658 = vcmask 254976
    %659 = vst.msk [vmem:[#allocation2] sm:$0x3] %vm658, %v657
    %v660 = vld [vmem:[%s6] sm:$0xff]
    %v661 = vld [vmem:[%s6 + $0x8] sm:$0xff]
    %v662 = vld [vmem:[%s6 + $0x10] sm:$0xff]
    %v663 = vld [vmem:[%s6 + $0x18] sm:$0xff]
    %v665 = vsel %vm41, %v657, 0
    %667 = vmatprep.subr.mxu0 0.0
    %668 = vmatpush1.msra.mxu0 %v660
    %669 = vmatprep.subr.mxu0 0.0
    %670 = vmatpush1.msra.mxu0 %v661
    %671 = vmatprep.subr.mxu0 0.0
    %672 = vmatpush1.msra.mxu0 %v662
    %673 = vmatprep.subr.mxu0 0.0
    %674 = vmatpush1.msra.mxu0 %v663
    %675 = vmatprep.subr.mxu0 0.0
    %676 = vmatpush1.msra.mxu0 0.0
    %677 = vmatprep.subr.mxu0 0.0
    %678 = vmatpush1.msra.mxu0 0.0
    %679 = vmatprep.subr.mxu0 0.0
    %680 = vmatpush1.msra.mxu0 0.0
    %681 = vmatprep.subr.mxu0 0.0
    %682 = vmatpush1.msra.mxu0 0.0
    %683 = vmatprep.subr.mxu0 0.0
    %684 = vmatpush1.msra.mxu0 0.0
    %685 = vmatprep.subr.mxu0 0.0
    %686 = vmatpush1.msra.mxu0 0.0
    %687 = vmatprep.subr.mxu0 0.0
    %688 = vmatpush1.msra.mxu0 0.0
    %689 = vmatprep.subr.mxu0 0.0
    %690 = vmatpush1.msra.mxu0 0.0
    %691 = vmatprep.subr.mxu0 0.0
    %692 = vmatpush1.msra.mxu0 0.0
    %693 = vmatprep.subr.mxu0 0.0
    %694 = vmatpush1.msra.mxu0 0.0
    %695 = vmatprep.subr.mxu0 0.0
    %696 = vmatpush1.msra.mxu0 0.0
    %697 = vmatprep.subr.mxu0 0.0
    %698 = vmatpush1.msra.mxu0 0.0
    %699 = vmatprep.subr.mxu0 0.0
    %700 = vmatpush1.msra.mxu0 0.0
    %701 = vmatprep.subr.mxu0 0.0
    %702 = vmatpush1.msra.mxu0 0.0
    %703 = vmatprep.subr.mxu0 0.0
    %704 = vmatpush1.msra.mxu0 0.0
    %705 = vmatprep.subr.mxu0 0.0
    %706 = vmatpush1.msra.mxu0 0.0
    %707 = vmatprep.subr.mxu0 0.0
    %708 = vmatpush1.msra.mxu0 0.0
    %709 = vmatprep.subr.mxu0 0.0
    %710 = vmatpush1.msra.mxu0 0.0
    %711 = vmatprep.subr.mxu0 0.0
    %712 = vmatpush1.msra.mxu0 0.0
    %713 = vmatprep.subr.mxu0 0.0
    %714 = vmatpush1.msra.mxu0 0.0
    %715 = vmatprep.subr.mxu0 0.0
    %716 = vmatpush1.msra.mxu0 0.0
    %717 = vmatprep.subr.mxu0 0.0
    %718 = vmatpush1.msra.mxu0 0.0
    %719 = vmatprep.subr.mxu0 0.0
    %720 = vmatpush1.msra.mxu0 0.0
    %721 = vmatprep.subr.mxu0 0.0
    %722 = vmatpush1.msra.mxu0 0.0
    %723 = vmatprep.subr.mxu0 0.0
    %724 = vmatpush1.msra.mxu0 0.0
    %725 = vmatprep.subr.mxu0 0.0
    %726 = vmatpush1.msra.mxu0 0.0
    %727 = vmatprep.subr.mxu0 0.0
    %728 = vmatpush1.msra.mxu0 0.0
    %729 = vmatprep.subr.mxu0 0.0
    %730 = vmatpush1.msra.mxu0 0.0
    %731 = vmatprep.mubr.f32.mxu0 0.0
    %732 = vmatmul.mubr.f32.gmra.mrb[0].mxu0 %v665
    %v733 = vpop.f32.mrb[0].mxu0
    %v734 = vadd.f32 0.0, %v733
    %v735 = vpop.f32.mrb[0].mxu0
    %736 = vdwg.mxu0
    %v737 = vmul.f32 %v734, 0.25
    %v738 = vld [vmem:[%s7] sm:$0xff]
    %v739 = vld [vmem:[%s7 + $0x8] sm:$0xff]
    %v740 = vld [vmem:[%s7 + $0x10] sm:$0xff]
    %v741 = vld [vmem:[%s7 + $0x18] sm:$0xff]
    %v742 = vld [vmem:[%s8] sm:$0x1]
    %v744 = vlaneseq
    %v745 = vshrl.u32 %v744, 7
    %v746 = vsub.s32 0, %v745
    %v747 = vrot.slane %v742, %v746
    %v750 = vsel %vm41, %v737, 0
    %752 = vmatprep.subr.mxu0 0.0
    %753 = vmatpush1.msra.mxu0 %v738
    %754 = vmatprep.subr.mxu0 0.0
    %755 = vmatpush1.msra.mxu0 %v739
    %756 = vmatprep.subr.mxu0 0.0
    %757 = vmatpush1.msra.mxu0 %v740
    %758 = vmatprep.subr.mxu0 0.0
    %759 = vmatpush1.msra.mxu0 %v741
    %760 = vmatprep.subr.mxu0 0.0
    %761 = vmatpush1.msra.mxu0 0.0
    %762 = vmatprep.subr.mxu0 0.0
    %763 = vmatpush1.msra.mxu0 0.0
    %764 = vmatprep.subr.mxu0 0.0
    %765 = vmatpush1.msra.mxu0 0.0
    %766 = vmatprep.subr.mxu0 0.0
    %767 = vmatpush1.msra.mxu0 0.0
    %768 = vmatprep.subr.mxu0 0.0
    %769 = vmatpush1.msra.mxu0 0.0
    %770 = vmatprep.subr.mxu0 0.0
    %771 = vmatpush1.msra.mxu0 0.0
    %772 = vmatprep.subr.mxu0 0.0
    %773 = vmatpush1.msra.mxu0 0.0
    %774 = vmatprep.subr.mxu0 0.0
    %775 = vmatpush1.msra.mxu0 0.0
    %776 = vmatprep.subr.mxu0 0.0
    %777 = vmatpush1.msra.mxu0 0.0
    %778 = vmatprep.subr.mxu0 0.0
    %779 = vmatpush1.msra.mxu0 0.0
    %780 = vmatprep.subr.mxu0 0.0
    %781 = vmatpush1.msra.mxu0 0.0
    %782 = vmatprep.subr.mxu0 0.0
    %783 = vmatpush1.msra.mxu0 0.0
    %784 = vmatprep.subr.mxu0 0.0
    %785 = vmatpush1.msra.mxu0 0.0
    %786 = vmatprep.subr.mxu0 0.0
    %787 = vmatpush1.msra.mxu0 0.0
    %788 = vmatprep.subr.mxu0 0.0
    %789 = vmatpush1.msra.mxu0 0.0
    %790 = vmatprep.subr.mxu0 0.0
    %791 = vmatpush1.msra.mxu0 0.0
    %792 = vmatprep.subr.mxu0 0.0
    %793 = vmatpush1.msra.mxu0 0.0
    %794 = vmatprep.subr.mxu0 0.0
    %795 = vmatpush1.msra.mxu0 0.0
    %796 = vmatprep.subr.mxu0 0.0
    %797 = vmatpush1.msra.mxu0 0.0
    %798 = vmatprep.subr.mxu0 0.0
    %799 = vmatpush1.msra.mxu0 0.0
    %800 = vmatprep.subr.mxu0 0.0
    %801 = vmatpush1.msra.mxu0 0.0
    %802 = vmatprep.subr.mxu0 0.0
    %803 = vmatpush1.msra.mxu0 0.0
    %804 = vmatprep.subr.mxu0 0.0
    %805 = vmatpush1.msra.mxu0 0.0
    %806 = vmatprep.subr.mxu0 0.0
    %807 = vmatpush1.msra.mxu0 0.0
    %808 = vmatprep.subr.mxu0 0.0
    %809 = vmatpush1.msra.mxu0 0.0
    %810 = vmatprep.subr.mxu0 0.0
    %811 = vmatpush1.msra.mxu0 0.0
    %812 = vmatprep.subr.mxu0 0.0
    %813 = vmatpush1.msra.mxu0 0.0
    %814 = vmatprep.subr.mxu0 0.0
    %815 = vmatpush1.msra.mxu0 0.0
    %816 = vmatprep.mubr.f32.mxu0 0.0
    %817 = vmatmul.mubr.f32.gmra.mrb[0].mxu0 %v750
    %v818 = vpop.f32.mrb[0].mxu0
    %v819 = vadd.f32 %v747, %v818
    %v820 = vpop.f32.mrb[0].mxu0
    %821 = vdwg.mxu0
    %vm822 = vcmask 123904
    %823 = vst.msk [vmem:[#allocation4] sm:$0x3] %vm822, %v819
    // Predicated region
    $region38: #{attention_memory.1} parent=1 // pred_check
      _
    $region39: #{attention_memory.1} parent=1 // pred_check_branch
      %825 = sbr.rel (0) target = $region41
    $region40: #{attention_memory.1} parent=1 // pred_region
      %s827 = ssub.s32 32, 32
      %828 = vsyncadd [#allocation3], %s827
      %s830 = sshll.u32 [#allocation2], 4
      %s831 = int_to_ptr.vmem [resolvable:$true] %s830
      %833 = dma.vmem_to_hbm [thread:$0]  %s831, 32, %s9, [#allocation3]
    $region41: #{attention_memory.1} parent=1 // pred_fallthru
      _
    // Predicated region
    $region42: #{attention_memory.1} parent=1 // pred_check
      _
    $region43: #{attention_memory.1} parent=1 // pred_check_branch
      %835 = sbr.rel (0) target = $region45
    $region44: #{attention_memory.1} parent=1 // pred_region
      %s837 = ssub.s32 32, 32
      %838 = vsyncadd [#allocation5], %s837
      %s840 = sshll.u32 [#allocation4], 4
      %s841 = int_to_ptr.vmem [resolvable:$true] %s840
      %843 = dma.vmem_to_hbm [thread:$0]  %s841, 32, %s10, [#allocation5]
    $region45: #{attention_memory.1} parent=1 // pred_fallthru
      _
    // Predicated region
    $region46: #{attention_memory.1} parent=1 // pred_check
      _
    $region47: #{attention_memory.1} parent=1 // pred_check_branch
      %845 = sbr.rel (0) target = $region49
    $region48: #{attention_memory.1} parent=1 // pred_region
      %846 = dma.done [#allocation3], 32
    $region49: #{attention_memory.1} parent=1 // pred_fallthru
      _
    // Predicated region
    $region50: #{attention_memory.1} parent=1 // pred_check
      _
    $region51: #{attention_memory.1} parent=1 // pred_check_branch
      %848 = sbr.rel (0) target = $region53
    $region52: #{attention_memory.1} parent=1 // pred_region
      %849 = dma.done [#allocation5], 32
    $region53: #{attention_memory.1} parent=1 // pred_fallthru
      _
    %850 = vsyncpa [#allocation3], 1
    %851 = vsyncpa [#allocation5], 1

</llo_original>
